<compile_context>
chip_gen: v7x
topology: tpu7x:2x2x1
jax: 0.10.0
libtpu: 0.0.40
codegen_flags: <defaults>
</compile_context>

<pallas_src>
import jax
import jax.numpy as jnp
from jax.experimental import pallas as pl
from jax.experimental.pallas import tpu as pltpu

EPS = 1e-5
LANES = 128          # channel padding target (lane-dense outputs)
TM_TARGET = 256      # rows per grid step (multiple of 8)
MXU_DTYPE = jnp.bfloat16   # MXU input dtype (bf16 on v6e/v7x; accumulation stays f32)


# ---------------------------------------------------------------------------
# small helpers
# ---------------------------------------------------------------------------
def _round_up(x, m):
    return (x + m - 1) // m * m


def _tiling(M, tm_target=TM_TARGET):
    tm = min(tm_target, _round_up(M, 8))
    m_pad = _round_up(M, tm)
    return tm, m_pad


def _pad_last(a, target):
    pad = target - a.shape[-1]
    if pad == 0:
        return a
    return jnp.pad(a, [(0, 0)] * (a.ndim - 1) + [(0, pad)])


def _pad_rows(a, target):
    pad = target - a.shape[0]
    if pad == 0:
        return a
    return jnp.pad(a, [(0, pad)] + [(0, 0)] * (a.ndim - 1))


# ---------------------------------------------------------------------------
# Pallas kernels
# ---------------------------------------------------------------------------
def _matmul_stats_kernel(p_ref, w_ref, y_ref, stats_ref):
    """y_tile = p_tile @ w (f32 acc); accumulate per-channel sum / sumsq across the grid."""
    y = jnp.dot(p_ref[...], w_ref[...], preferred_element_type=jnp.float32)
    y_ref[...] = y

    @pl.when(pl.program_id(0) == 0)
    def _():
        stats_ref[...] = jnp.zeros_like(stats_ref)

    # Channel dim sits on lanes, so the M-axis reductions stay on the XLU.
    s1 = jnp.sum(y, axis=0, keepdims=True)        # (1, Cp)  sum
    s2 = jnp.sum(y * y, axis=0, keepdims=True)    # (1, Cp)  sum of squares
    stats_ref[0:1, :] += s1
    stats_ref[1:2, :] += s2


def _scale_shift_relu_kernel(y_ref, sc_ref, sh_ref, o_ref):
    """o = relu(y * scale + shift)   (BN affine folded into scale/shift)."""
    o_ref[...] = jnp.maximum(y_ref[...] * sc_ref[...] + sh_ref[...], 0.0)


def _dual_apply_kernel(a_ref, b_ref, sa_ref, sha_ref, sb_ref, shb_ref, o_ref):
    """o = relu( (a*sa+sha) + (b*sb+shb) )  — main-path BN2 + skip-path BN + add + ReLU."""
    y = (a_ref[...] * sa_ref[...] + sha_ref[...]
         + b_ref[...] * sb_ref[...] + shb_ref[...])
    o_ref[...] = jnp.maximum(y, 0.0)


# ---------------------------------------------------------------------------
# pallas_call wrappers
# ---------------------------------------------------------------------------
def _matmul_stats(p, w, tm):
    """p: (M_pad, K) bf16, w: (K, Cp) bf16 -> (y (M_pad, Cp) f32, stats (2, Cp) f32)."""
    m_pad, K = p.shape
    cp = w.shape[1]
    grid = (m_pad // tm,)
    return pl.pallas_call(
        _matmul_stats_kernel,
        out_shape=(jax.ShapeDtypeStruct((m_pad, cp), jnp.float32),
                   jax.ShapeDtypeStruct((2, cp), jnp.float32)),
        grid_spec=pltpu.PrefetchScalarGridSpec(
            num_scalar_prefetch=0,
            grid=grid,
            in_specs=[pl.BlockSpec((tm, K), lambda i: (i, 0)),
                      pl.BlockSpec((K, cp), lambda i: (0, 0))],     # weights resident
            out_specs=(pl.BlockSpec((tm, cp), lambda i: (i, 0)),
                       pl.BlockSpec((2, cp), lambda i: (0, 0)))),   # resident accumulator
        compiler_params=pltpu.CompilerParams(
            dimension_semantics=("arbitrary",)),   # stats accumulate across M -> sequential
    )(p, w)


def _scale_shift_relu(y, scale, shift, tm):
    m_pad, cp = y.shape
    return pl.pallas_call(
        _scale_shift_relu_kernel,
        out_shape=jax.ShapeDtypeStruct((m_pad, cp), jnp.float32),
        grid_spec=pltpu.PrefetchScalarGridSpec(
            num_scalar_prefetch=0,
            grid=(m_pad // tm,),
            in_specs=[pl.BlockSpec((tm, cp), lambda i: (i, 0)),
                      pl.BlockSpec((1, cp), lambda i: (0, 0)),
                      pl.BlockSpec((1, cp), lambda i: (0, 0))],
            out_specs=pl.BlockSpec((tm, cp), lambda i: (i, 0))),
        compiler_params=pltpu.CompilerParams(
            dimension_semantics=("parallel",)),    # independent tiles -> 2 TCs on v7x
    )(y, scale, shift)


def _residual_apply(a, a_col, b, b_col, sa, sha, sb, shb, tm):
    m_pad = a.shape[0]
    cp = sa.shape[1]
    return pl.pallas_call(
        _dual_apply_kernel,
        out_shape=jax.ShapeDtypeStruct((m_pad, cp), jnp.float32),
        grid_spec=pltpu.PrefetchScalarGridSpec(
            num_scalar_prefetch=0,
            grid=(m_pad // tm,),
            in_specs=[pl.BlockSpec((tm, cp), lambda i, c=a_col: (i, c)),
                      pl.BlockSpec((tm, cp), lambda i, c=b_col: (i, c)),
                      pl.BlockSpec((1, cp), lambda i: (0, 0)),
                      pl.BlockSpec((1, cp), lambda i: (0, 0)),
                      pl.BlockSpec((1, cp), lambda i: (0, 0)),
                      pl.BlockSpec((1, cp), lambda i: (0, 0))],
            out_specs=pl.BlockSpec((tm, cp), lambda i: (i, 0))),
        compiler_params=pltpu.CompilerParams(
            dimension_semantics=("parallel",)),
    )(a, b, sa, sha, sb, shb)


# ---------------------------------------------------------------------------
# plain-JAX glue: im2col, weight flattening, BN folding
# ---------------------------------------------------------------------------
def _im2col_3x3(x_nhwc):
    """(N, H, W, C) -> (N*H*W, 9*C) with column order (dy, dx, c)."""
    N, H, W, C = x_nhwc.shape
    xp = jnp.pad(x_nhwc, ((0, 0), (1, 1), (1, 1), (0, 0)))
    cols = []
    for dy in range(3):
        for dx in range(3):
            cols.append(xp[:, dy:dy + H, dx:dx + W, :])
    return jnp.concatenate(cols, axis=-1).reshape(N * H * W, 9 * C)


def _flatten_w3x3(w_oihw):
    """PyTorch (Co, Ci, 3, 3) -> (9*Ci, Co) matching _im2col_3x3 column order."""
    Co = w_oihw.shape[0]
    return jnp.transpose(w_oihw, (2, 3, 1, 0)).reshape(-1, Co)


def _bn_scale_shift(stats, count, gamma_pad, beta_pad):
    """Fold training-mode BN (biased variance) into a single (1,Cp) scale/shift."""
    mean = stats[0:1, :] / count
    # E[y^2]-E[y]^2 in f32; clamp at 0 to guard cancellation (inputs here are O(1)).
    var = jnp.maximum(stats[1:2, :] / count - mean * mean, 0.0)
    scale = gamma_pad[None, :] * jax.lax.rsqrt(var + EPS)
    shift = beta_pad[None, :] - mean * scale
    return scale, shift


# ---------------------------------------------------------------------------
# forward pass
# ---------------------------------------------------------------------------
def residual_block_forward(x_nchw, params, tm_target=TM_TARGET):
    """ResidualBlock forward (NCHW in/out). Handles projection and identity skip."""
    N, Ci, H, W = x_nchw.shape
    Co = params["w1"].shape[0]
    cp = _round_up(Co, LANES)              # lane-dense channel padding
    M = N * H * W
    tm, m_pad = _tiling(M, tm_target)

    x = jnp.transpose(x_nchw, (0, 2, 3, 1)).astype(jnp.float32)   # NHWC

    # ---- pass A: conv1 matmul + BN1 stats (conv bias dropped: no-op before BN) ----
    p1 = _pad_rows(_im2col_3x3(x), m_pad).astype(MXU_DTYPE)       # (M_pad, 9*Ci)
    w1 = _pad_last(_flatten_w3x3(params["w1"]), cp).astype(MXU_DTYPE)
    y1_raw, st1 = _matmul_stats(p1, w1, tm)

    sc1, sh1 = _bn_scale_shift(st1, M,
                               _pad_last(params["g1"], cp),
                               _pad_last(params["be1"], cp))

    # ---- pass B: BN1 apply + ReLU ----
    y1 = _scale_shift_relu(y1_raw, sc1, sh1, tm)
    y1_img = y1[:M, :Co].reshape(N, H, W, Co)

    # ---- pass C: conv2 (+ fused 1x1 skip conv) matmul + stats ----
    p2 = _im2col_3x3(y1_img)                                      # (M, 9*Co)

    if Ci != Co:
        # Fuse skip 1x1 into the same MXU call: [p2 | x] @ [[w2, 0], [0, wsk]]
        xs = x.reshape(M, Ci)
        p_cat = _pad_rows(jnp.concatenate([p2, xs], axis=1), m_pad).astype(MXU_DTYPE)
        K2, Ksk = 9 * Co, Ci
        w2f = _pad_last(_flatten_w3x3(params["w2"]), cp)          # (9*Co, Cp)
        wskf = _pad_last(jnp.transpose(params["wsk"][:, :, 0, 0], (1, 0)), cp)  # (Ci, Cp)
        w_cat = jnp.zeros((K2 + Ksk, 2 * cp), jnp.float32)
        w_cat = w_cat.at[:K2, :cp].set(w2f)
        w_cat = w_cat.at[K2:, cp:].set(wskf)
        z_raw, st2 = _matmul_stats(p_cat, w_cat.astype(MXU_DTYPE), tm)  # (M_pad, 2*Cp)

        sc2, sh2 = _bn_scale_shift(st2[:, :cp], M,
                                   _pad_last(params["g2"], cp),
                                   _pad_last(params["be2"], cp))
        scs, shs = _bn_scale_shift(st2[:, cp:], M,
                                   _pad_last(params["gsk"], cp),
                                   _pad_last(params["besk"], cp))
        # ---- pass D: BN2 + skip-BN + add + ReLU (columns 0 / 1 of z_raw) ----
        out = _residual_apply(z_raw, 0, z_raw, 1, sc2, sh2, scs, shs, tm)
    else:
        # identity skip: residual = x (no conv, no BN)
        p2p = _pad_rows(p2, m_pad).astype(MXU_DTYPE)
        w2f = _pad_last(_flatten_w3x3(params["w2"]), cp).astype(MXU_DTYPE)
        z_raw, st2 = _matmul_stats(p2p, w2f, tm)                  # (M_pad, Cp)
        sc2, sh2 = _bn_scale_shift(st2, M,
                                   _pad_last(params["g2"], cp),
                                   _pad_last(params["be2"], cp))
        xs_pad = _pad_rows(_pad_last(x.reshape(M, Ci), cp), m_pad)
        ones = jnp.ones((1, cp), jnp.float32)
        zeros = jnp.zeros((1, cp), jnp.float32)
        out = _residual_apply(z_raw, 0, xs_pad, 0, sc2, sh2, ones, zeros, tm)

    out = out[:M, :Co].reshape(N, H, W, Co)
    return jnp.transpose(out, (0, 3, 1, 2))                        # back to NCHW


# ---------------------------------------------------------------------------
# pure-JAX reference (mirrors the PyTorch module, biases included)
# ---------------------------------------------------------------------------
def reference_forward(x, params):
    def conv(y, w, b, pad):
        out = jax.lax.conv_general_dilated(
            y, w, (1, 1), [(pad, pad), (pad, pad)],
            dimension_numbers=("NCHW", "OIHW", "NCHW"))
        return out + b[None, :, None, None]

    def bn(y, g, b):
        m = y.mean(axis=(0, 2, 3), keepdims=True)
        v = ((y - m) ** 2).mean(axis=(0, 2, 3), keepdims=True)
        return (y - m) / jnp.sqrt(v + EPS) * g[None, :, None, None] + b[None, :, None, None]

    if "wsk" in params:
        res = bn(conv(x, params["wsk"], params["bsk"], 0), params["gsk"], params["besk"])
    else:
        res = x
    out = jax.nn.relu(bn(conv(x, params["w1"], params["b1"], 1), params["g1"], params["be1"]))
    out = bn(conv(out, params["w2"], params["b2"], 1), params["g2"], params["be2"])
    return jax.nn.relu(out + res)


# ---------------------------------------------------------------------------
if __name__ == "__main__":
    key = jax.random.PRNGKey(0)

    def make_params(k, Ci, Co):
        ks = jax.random.split(k, 12)
        p = {
            "w1":  0.2 * jax.random.normal(ks[1], (Co, Ci, 3, 3), jnp.float32),
            "b1":  0.1 * jax.random.normal(ks[2], (Co,), jnp.float32),
            "g1":  1.0 + 0.1 * jax.random.normal(ks[3], (Co,), jnp.float32),
            "be1": 0.1 * jax.random.normal(ks[4], (Co,), jnp.float32),
            "w2":  0.2 * jax.random.normal(ks[5], (Co, Co, 3, 3), jnp.float32),
            "b2":  0.1 * jax.random.normal(ks[6], (Co,), jnp.float32),
            "g2":  1.0 + 0.1 * jax.random.normal(ks[7], (Co,), jnp.float32),
            "be2": 0.1 * jax.random.normal(ks[8], (Co,), jnp.float32),
        }
        if Ci != Co:
            p.update({
                "wsk":  0.2 * jax.random.normal(ks[9], (Co, Ci, 1, 1), jnp.float32),
                "bsk":  0.1 * jax.random.normal(ks[10], (Co,), jnp.float32),
                "gsk":  1.0 + 0.1 * jax.random.normal(ks[11], (Co,), jnp.float32),
                "besk": 0.1 * jax.random.normal(ks[0], (Co,), jnp.float32),
            })
        return p

    # tolerance is bf16-MXU-input scale; BN math and accumulation are f32
    RTOL = ATOL = 5e-2

    # case 1: projection skip (in_channels != out_channels)
    N, Ci, Co, H, W = 2, 4, 8, 16, 16
    k1, k2, k3, k4 = jax.random.split(key, 4)
    x = jax.random.normal(k1, (N, Ci, H, W), jnp.float32)
    params = make_params(k2, Ci, Co)
    out = jax.block_until_ready(residual_block_forward(x, params))
    ref = jax.block_until_ready(reference_forward(x, params))
    assert out.shape == (N, Co, H, W), out.shape
    assert jnp.allclose(out, ref, rtol=RTOL, atol=ATOL), float(jnp.max(jnp.abs(out - ref)))

    # case 2: identity skip (in_channels == out_channels)
    Ci2 = Co2 = 8
    x2 = jax.random.normal(k3, (N, Ci2, H, W), jnp.float32)
    params2 = make_params(k4, Ci2, Co2)
    out2 = jax.block_until_ready(residual_block_forward(x2, params2))
    ref2 = jax.block_until_ready(reference_forward(x2, params2))
    assert out2.shape == (N, Co2, H, W), out2.shape
    assert jnp.allclose(out2, ref2, rtol=RTOL, atol=ATOL), float(jnp.max(jnp.abs(out2 - ref2)))

    print("KERNEL_OK")
</pallas_src>

<mosaic_0001>
module attributes {stable_mosaic.version = 11 : i64} {
  func.func @_matmul_stats_kernel(%arg0: i32, %arg1: memref<256x36xbf16, #tpu.memory_space<vmem>>, %arg2: memref<36x128xbf16, #tpu.memory_space<vmem>>, %arg3: memref<256x128xf32, #tpu.memory_space<vmem>>, %arg4: memref<2x128xf32, #tpu.memory_space<vmem>>) attributes {dimension_semantics = [#tpu.dimension_semantics<arbitrary>], iteration_bounds = array<i64: 2>, scalar_prefetch = 0 : i64, scratch_operands = 0 : i64, tpu.core_type = #tpu.core_type<tc>, window_params = [{transform_indices = @transform_0, window_bounds = array<i64: 256, 36>}, {pipeline_mode = #tpu.pipeline_mode<synchronous>, transform_indices = @transform_1, window_bounds = array<i64: 36, 128>}, {transform_indices = @transform_2, window_bounds = array<i64: 256, 128>}, {pipeline_mode = #tpu.pipeline_mode<synchronous>, transform_indices = @transform_3, window_bounds = array<i64: 2, 128>}]} {
    %c0 = arith.constant 0 : index
    %c0_0 = arith.constant 0 : index
    %0 = vector.load %arg1[%c0, %c0_0] : memref<256x36xbf16, #tpu.memory_space<vmem>>, vector<256x36xbf16>
    %c0_1 = arith.constant 0 : index
    %c0_2 = arith.constant 0 : index
    %1 = vector.load %arg2[%c0_1, %c0_2] : memref<36x128xbf16, #tpu.memory_space<vmem>>, vector<36x128xbf16>
    %cst = arith.constant dense<0.000000e+00> : vector<256x128xf32>
    %2 = tpu.matmul %0, %1, %cst {dimension_numbers = #tpu.dot_dimension_numbers<[1], [0], [0], [1], [0, 0, 1, 1], [], []>} : vector<256x36xbf16>, vector<36x128xbf16>, vector<256x128xf32> -> vector<256x128xf32>
    %c0_3 = arith.constant 0 : index
    %c0_4 = arith.constant 0 : index
    %3 = vector.load %arg3[%c0_3, %c0_4] : memref<256x128xf32, #tpu.memory_space<vmem>>, vector<256x128xf32>
    tpu.vector_store %arg3[%c0_3, %c0_4], %2 {strides = array<i32>} : memref<256x128xf32, #tpu.memory_space<vmem>>, vector<256x128xf32>,
    %c0_i32 = arith.constant 0 : i32
    %4 = arith.cmpi eq, %arg0, %c0_i32 : i32
    %5 = arith.extui %4 : i1 to i32
    %c0_i32_5 = arith.constant 0 : i32
    %6 = arith.cmpi ne, %5, %c0_i32_5 : i32
    scf.if %6 {
      %cst_15 = arith.constant 0.000000e+00 : f32
      %18 = vector.broadcast %cst_15 : f32 to vector<2x128xf32>
      %c0_16 = arith.constant 0 : index
      %c0_17 = arith.constant 0 : index
      %19 = vector.load %arg4[%c0_16, %c0_17] : memref<2x128xf32, #tpu.memory_space<vmem>>, vector<2x128xf32>
      tpu.vector_store %arg4[%c0_16, %c0_17], %18 {strides = array<i32>} : memref<2x128xf32, #tpu.memory_space<vmem>>, vector<2x128xf32>,
    } else {
    }
    %cst_6 = arith.constant dense<0.000000e+00> : vector<128xf32>
    %7 = vector.multi_reduction <add>, %2, %cst_6 [0] : vector<256x128xf32> to vector<128xf32>
    %8 = vector.shape_cast %7 : vector<128xf32> to vector<1x128xf32>
    %9 = arith.mulf %2, %2 : vector<256x128xf32>
    %cst_7 = arith.constant dense<0.000000e+00> : vector<128xf32>
    %10 = vector.multi_reduction <add>, %9, %cst_7 [0] : vector<256x128xf32> to vector<128xf32>
    %11 = vector.shape_cast %10 : vector<128xf32> to vector<1x128xf32>
    %c0_8 = arith.constant 0 : index
    %c0_9 = arith.constant 0 : index
    %12 = vector.load %arg4[%c0_8, %c0_9] : memref<2x128xf32, #tpu.memory_space<vmem>>, vector<1x128xf32>
    %13 = arith.addf %12, %8 : vector<1x128xf32>
    %c0_10 = arith.constant 0 : index
    %c0_11 = arith.constant 0 : index
    %14 = vector.load %arg4[%c0_10, %c0_11] : memref<2x128xf32, #tpu.memory_space<vmem>>, vector<1x128xf32>
    tpu.vector_store %arg4[%c0_10, %c0_11], %13 {strides = array<i32>} : memref<2x128xf32, #tpu.memory_space<vmem>>, vector<1x128xf32>,
    %c1 = arith.constant 1 : index
    %c0_12 = arith.constant 0 : index
    %15 = vector.load %arg4[%c1, %c0_12] : memref<2x128xf32, #tpu.memory_space<vmem>>, vector<1x128xf32>
    %16 = arith.addf %15, %11 : vector<1x128xf32>
    %c1_13 = arith.constant 1 : index
    %c0_14 = arith.constant 0 : index
    %17 = vector.load %arg4[%c1_13, %c0_14] : memref<2x128xf32, #tpu.memory_space<vmem>>, vector<1x128xf32>
    tpu.vector_store %arg4[%c1_13, %c0_14], %16 {strides = array<i32>} : memref<2x128xf32, #tpu.memory_space<vmem>>, vector<1x128xf32>,
    return
  }
  func.func @transform_0(%arg0: i32) -> (i32, i32) {
    %c0_i32 = arith.constant 0 : i32
    %c0_i32_0 = arith.constant 0 : i32
    return %arg0, %c0_i32 : i32, i32
  }
  func.func @transform_1(%arg0: i32) -> (i32, i32) {
    %c0_i32 = arith.constant 0 : i32
    %c0_i32_0 = arith.constant 0 : i32
    %c0_i32_1 = arith.constant 0 : i32
    return %c0_i32, %c0_i32_0 : i32, i32
  }
  func.func @transform_2(%arg0: i32) -> (i32, i32) {
    %c0_i32 = arith.constant 0 : i32
    %c0_i32_0 = arith.constant 0 : i32
    return %arg0, %c0_i32 : i32, i32
  }
  func.func @transform_3(%arg0: i32) -> (i32, i32) {
    %c0_i32 = arith.constant 0 : i32
    %c0_i32_0 = arith.constant 0 : i32
    %c0_i32_1 = arith.constant 0 : i32
    return %c0_i32, %c0_i32_0 : i32, i32
  }
}

</mosaic_0001>

<llo_original>
// kernel: tpu_custom_call.1
$region0: #{tpu_custom_call.1}
  #allocation0 [shape = 'u32[]', space=smem, size = 0x4, offset = 0x4, fixed_abs, tag = 'smem constant byte address 0x4 - core index']
  #allocation1 [shape = 'u32[144,128]{1,0:T(1,128)}', space=vmem, size = 0x12000, scoped, tag = 'internal scratch']
  %s0 = inlined_call_operand.vmem [shape: bf16[512,36], index: 0, kind: input, shape index: {}]
  %s1 = inlined_call_operand.vmem [shape: bf16[36,128], index: 1, kind: input, shape index: {}]
  %s2 = inlined_call_operand.hbm [shape: f32[512,128], index: 2, kind: output, shape index: {0}]
  %s3 = inlined_call_operand.hbm [shape: f32[2,128], index: 3, kind: output, shape index: {1}]
  %4 = xla_tuple %s2, %s3
  %s5 = sld [smem:[#allocation0]]
  $region53: #{tpu_custom_call.1} parent=0
    _
  %s7 = ssub.s32 1, %s5
  %s8 = scalar_select 0, %s7, %s5
  $region1: #{tpu_custom_call.1} parent=0
    #allocation2 [shape = 'u8[262144]{0}', space=vmem, size = 0x40000, scoped, tag = 'output window, operand 0']
    #allocation3 [shape = 's32[2]{0}', space=sflag, size = 0x8, scoped, tag = 'scoped memory for tpu_custom_call.1']
    #allocation4 [shape = 'u8[1024]{0}', space=vmem, size = 0x400, scoped, tag = 'output window, operand 1, single buffered']
    #allocation5 [shape = 's32[1]{0}', space=sflag, size = 0x4, scoped, tag = 'scoped memory for tpu_custom_call.1']
    %9 = vsyncpa [#allocation3], 0
    %s10 = scalar_lea.sflag [#allocation3], 1
    %11 = vsyncpa %s10, 0
    %12 = vsyncpa [#allocation5], 0
    loop: start=0, step=1, limit=4
    $region2: #{tpu_custom_call.1} parent=1 // loop_pre_header
      _
    $region3: #{tpu_custom_call.1} parent=1 // loop_header
      %s14 = sphi 0, %s18
      %p15 = scmp.ge.s32.totalorder %s14, 4
      %s24 = sphi 0, %s26
      %s27 = sphi 0, %s24
      %s28 = sphi 0, %s27
      %s44 = sphi 0, %s28
      %s48 = sphi 0, %s48
      %s50 = sphi 0, %s48
      %s51 = sphi 0, %s50
      %s65 = sphi 0, %s51
      %s71 = sphi 0, %s73
      %s74 = sphi 0, %s71
      %s75 = sphi 0, %s74
      %s91 = sphi 0, %s75
      %s95 = sphi 0, %s95
      %s97 = sphi 0, %s95
      %s98 = sphi 0, %s97
      %s112 = sphi 0, %s98
    $region4: #{tpu_custom_call.1} parent=1 // loop_header_branch
      %17 = sbr.rel (%p15) target = $region8
    $region5: #{tpu_custom_call.1} parent=1 // loop_body
      %s19 = ssub.s32 %s14, 1
      %s20 = ssub.s32 %s14, 2
      %s21 = sadd.s32 %s14, 1
      %s22 = ssub.s32 %s14, %s21
      %p23 = scmp.eq.s32.totalorder %s22, 0
      %s25 = sadd.s32 %s24, 1
      %s26 = scalar_select %p23, %s24, %s25
      %p29 = pneg %p23
      %p30 = scmp.eq.s32.totalorder %s14, 1
      %p31 = por %p29, %p30
      %p32 = scmp.ne.s32.totalorder %s24, %s27
      %p33 = scmp.eq.s32.totalorder %s14, 0
      %p34 = por %p32, %p33
      %p35 = scmp.ne.s32.totalorder %s24, %s27
      %p36 = scmp.eq.s32.totalorder %s19, 1
      %p37 = por %p35, %p36
      %p38 = scmp.ne.s32.totalorder %s27, %s28
      %p39 = scmp.eq.s32.totalorder %s19, 0
      %p40 = por %p38, %p39
      %p41 = scmp.ne.s32.totalorder %s27, %s28
      %p42 = scmp.eq.s32.totalorder %s20, 1
      %p43 = por %p41, %p42
      %p45 = scmp.ne.s32.totalorder %s28, %s44
      %p46 = scmp.eq.s32.totalorder %s20, 0
      %p47 = por %p45, %p46
      %s49 = sadd.s32 %s48, 1
      %p52 = scmp.eq.s32.totalorder %s14, 1
      %p53 = scmp.ne.s32.totalorder %s48, %s50
      %p54 = scmp.eq.s32.totalorder %s14, 0
      %p55 = por %p53, %p54
      %p56 = scmp.ne.s32.totalorder %s48, %s50
      %p57 = scmp.eq.s32.totalorder %s19, 1
      %p58 = por %p56, %p57
      %p59 = scmp.ne.s32.totalorder %s50, %s51
      %p60 = scmp.eq.s32.totalorder %s19, 0
      %p61 = por %p59, %p60
      %p62 = scmp.ne.s32.totalorder %s50, %s51
      %p63 = scmp.eq.s32.totalorder %s20, 1
      %p64 = por %p62, %p63
      %p66 = scmp.ne.s32.totalorder %s51, %s65
      %p67 = scmp.eq.s32.totalorder %s20, 0
      %p68 = por %p66, %p67
      %s69 = ssub.s32 %s14, %s21
      %p70 = scmp.eq.s32.totalorder %s69, 0
      %s72 = sadd.s32 %s71, 1
      %s73 = scalar_select %p70, %s71, %s72
      %p76 = pneg %p70
      %p77 = scmp.eq.s32.totalorder %s14, 1
      %p78 = por %p76, %p77
      %p79 = scmp.ne.s32.totalorder %s71, %s74
      %p80 = scmp.eq.s32.totalorder %s14, 0
      %p81 = por %p79, %p80
      %p82 = scmp.ne.s32.totalorder %s71, %s74
      %p83 = scmp.eq.s32.totalorder %s19, 1
      %p84 = por %p82, %p83
      %p85 = scmp.ne.s32.totalorder %s74, %s75
      %p86 = scmp.eq.s32.totalorder %s19, 0
      %p87 = por %p85, %p86
      %p88 = scmp.ne.s32.totalorder %s74, %s75
      %p89 = scmp.eq.s32.totalorder %s20, 1
      %p90 = por %p88, %p89
      %p92 = scmp.ne.s32.totalorder %s75, %s91
      %p93 = scmp.eq.s32.totalorder %s20, 0
      %p94 = por %p92, %p93
      %s96 = sadd.s32 %s95, 1
      %p99 = scmp.eq.s32.totalorder %s14, 1
      %p100 = scmp.ne.s32.totalorder %s95, %s97
      %p101 = scmp.eq.s32.totalorder %s14, 0
      %p102 = por %p100, %p101
      %p103 = scmp.ne.s32.totalorder %s95, %s97
      %p104 = scmp.eq.s32.totalorder %s19, 1
      %p105 = por %p103, %p104
      %p106 = scmp.ne.s32.totalorder %s97, %s98
      %p107 = scmp.eq.s32.totalorder %s19, 0
      %p108 = por %p106, %p107
      %p109 = scmp.ne.s32.totalorder %s97, %s98
      %p110 = scmp.eq.s32.totalorder %s20, 1
      %p111 = por %p109, %p110
      %p113 = scmp.ne.s32.totalorder %s98, %s112
      %p114 = scmp.eq.s32.totalorder %s20, 0
      %p115 = por %p113, %p114
      %p116 = scmp.le.s32.totalorder 1, %s14
      %p117 = scmp.lt.s32.totalorder %s14, 3
      %p118 = pnand %p116, %p117
      %p119 = pneg %p118
      // Predicated region
      $region9: #{tpu_custom_call.1} parent=5 // pred_check
        _
      $region10: #{tpu_custom_call.1} parent=5 // pred_check_branch
        %121 = sbr.rel (%p118) target = $region12
      $region11: #{tpu_custom_call.1} parent=5 // pred_region
        %s122 = ssub.s32 %s14, 1
        // Predicated region
        $region13: #{tpu_custom_call.1} parent=11 // pred_check
          %p123 = pneg %p61
        $region14: #{tpu_custom_call.1} parent=11 // pred_check_branch
          %125 = sbr.rel (%p123) target = $region16
        $region15: #{tpu_custom_call.1} parent=11 // pred_region
          _
        $region16: #{tpu_custom_call.1} parent=11 // pred_fallthru
          _
      $region12: #{tpu_custom_call.1} parent=5 // pred_fallthru
        _
      %p126 = scmp.lt.s32.totalorder %s14, 2
      // Predicated region
      $region17: #{tpu_custom_call.1} parent=5 // pred_check
        %p127 = pneg %p126
      $region18: #{tpu_custom_call.1} parent=5 // pred_check_branch
        %129 = sbr.rel (%p127) target = $region20
      $region19: #{tpu_custom_call.1} parent=5 // pred_region
        // Predicated region
        $region21: #{tpu_custom_call.1} parent=19 // pred_check
          %p130 = pneg %p34
        $region22: #{tpu_custom_call.1} parent=19 // pred_check_branch
          %132 = sbr.rel (%p130) target = $region24
        $region23: #{tpu_custom_call.1} parent=19 // pred_region
          %s133 = smul.u32 32, %s14
          %p134 = scmp.lt.s32.totalorder %s133, 63
          %s135 = scalar_select %p134, %s133, 63
          %s136 = smul.addr %s135, 4
          %s137 = scalar_lea.vmem %s0, %s136
          %s138 = smul.u32 32, %s14
        $region24: #{tpu_custom_call.1} parent=19 // pred_fallthru
          _
      $region20: #{tpu_custom_call.1} parent=5 // pred_fallthru
        _
      %p139 = scmp.le.s32.totalorder 1, %s14
      %p140 = scmp.lt.s32.totalorder %s14, 3
      %p141 = pnand %p139, %p140
      %p142 = pneg %p141
      // Predicated region
      $region25: #{tpu_custom_call.1} parent=5 // pred_check
        _
      $region26: #{tpu_custom_call.1} parent=5 // pred_check_branch
        %144 = sbr.rel (%p141) target = $region28
      $region27: #{tpu_custom_call.1} parent=5 // pred_region
        %s145 = ssub.s32 %s14, 1
        %s146 = smul.u32 32, %s19
        %p147 = scmp.lt.s32.totalorder %s146, 63
        %s148 = scalar_select %p147, %s146, 63
        %s149 = smul.addr %s148, 4
        %s150 = scalar_lea.vmem %s0, %s149
        %p151 = pneg %p40
        %p152 = pneg %p37
        %p153 = pneg %p61
        %p154 = pneg %p58
        %p155 = pneg %p87
        %p156 = pneg %p84
        %s157 = sand.u32 %s74, 1
        %s158 = scalar_lea.sflag [#allocation3], %s157
        %s159 = sand.u32 %s74, 1
        %s160 = smul.addr %s159, 256
        %s161 = scalar_lea.vmem [#allocation2], %s160
        %p162 = pneg %p108
        %p163 = pneg %p105
        %s164 = smul.u32 32, %s19
        %p165 = scmp.lt.s32.totalorder %s164, 63
        %s166 = scalar_select %p165, %s164, 63
        %s167 = smul.addr %s166, 4
        %s168 = scalar_lea.vmem %s0, %s167
        %s169 = smul.u32 32, %s19
        %s170 = smul.u32 32, %s19
        %v172 = vld [vmem:[%s168] sm:$0xf]
        %v173 = vld [vmem:[%s168 + $0x4] sm:$0xf]
        %v174 = vld [vmem:[%s168 + $0x8] sm:$0xf]
        %v175 = vld [vmem:[%s168 + $0xc] sm:$0xf]
        %v176 = vld [vmem:[%s168 + $0x10] sm:$0xf]
        %v177 = vld [vmem:[%s168 + $0x14] sm:$0xf]
        %v178 = vld [vmem:[%s168 + $0x18] sm:$0xf]
        %v179 = vld [vmem:[%s168 + $0x1c] sm:$0xf]
        %v180 = vld [vmem:[%s168 + $0x20] sm:$0xf]
        %v181 = vld [vmem:[%s168 + $0x24] sm:$0xf]
        %v182 = vld [vmem:[%s168 + $0x28] sm:$0xf]
        %v183 = vld [vmem:[%s168 + $0x2c] sm:$0xf]
        %v184 = vld [vmem:[%s168 + $0x30] sm:$0xf]
        %v185 = vld [vmem:[%s168 + $0x34] sm:$0xf]
        %v186 = vld [vmem:[%s168 + $0x38] sm:$0xf]
        %v187 = vld [vmem:[%s168 + $0x3c] sm:$0xf]
        %v188 = vld [vmem:[%s168 + $0x40] sm:$0xf]
        %v189 = vld [vmem:[%s168 + $0x44] sm:$0xf]
        %v190 = vld [vmem:[%s168 + $0x48] sm:$0xf]
        %v191 = vld [vmem:[%s168 + $0x4c] sm:$0xf]
        %v192 = vld [vmem:[%s168 + $0x50] sm:$0xf]
        %v193 = vld [vmem:[%s168 + $0x54] sm:$0xf]
        %v194 = vld [vmem:[%s168 + $0x58] sm:$0xf]
        %v195 = vld [vmem:[%s168 + $0x5c] sm:$0xf]
        %v196 = vld [vmem:[%s168 + $0x60] sm:$0xf]
        %v197 = vld [vmem:[%s168 + $0x64] sm:$0xf]
        %v198 = vld [vmem:[%s168 + $0x68] sm:$0xf]
        %v199 = vld [vmem:[%s168 + $0x6c] sm:$0xf]
        %v200 = vld [vmem:[%s168 + $0x70] sm:$0xf]
        %v201 = vld [vmem:[%s168 + $0x74] sm:$0xf]
        %v202 = vld [vmem:[%s168 + $0x78] sm:$0xf]
        %v203 = vld [vmem:[%s168 + $0x7c] sm:$0xf]
        %v204 = vld [vmem:[%s1] sm:$0xf]
        %v205 = vld [vmem:[%s1 + $0x4] sm:$0xf]
        %v206 = vld [vmem:[%s1 + $0x8] sm:$0xf]
        %v207 = vld [vmem:[%s1 + $0xc] sm:$0xf]
        %v208 = vld [vmem:[%s1 + $0x10] sm:$0x3]
        %v241 = vunpack.c.l.b16 %v172
        %v242 = vunpack.c.l.b16 %v173
        %v243 = vunpack.c.l.b16 %v174
        %v244 = vunpack.c.l.b16 %v175
        %v245 = vunpack.c.l.b16 %v176
        %v246 = vunpack.c.l.b16 %v177
        %v247 = vunpack.c.l.b16 %v178
        %v248 = vunpack.c.l.b16 %v179
        %v249 = vunpack.c.l.b16 %v180
        %v250 = vunpack.c.l.b16 %v181
        %v251 = vunpack.c.l.b16 %v182
        %v252 = vunpack.c.l.b16 %v183
        %v253 = vunpack.c.l.b16 %v184
        %v254 = vunpack.c.l.b16 %v185
        %v255 = vunpack.c.l.b16 %v186
        %v256 = vunpack.c.l.b16 %v187
        %v257 = vunpack.c.l.b16 %v188
        %v258 = vunpack.c.l.b16 %v189
        %v259 = vunpack.c.l.b16 %v190
        %v260 = vunpack.c.l.b16 %v191
        %v261 = vunpack.c.l.b16 %v192
        %v262 = vunpack.c.l.b16 %v193
        %v263 = vunpack.c.l.b16 %v194
        %v264 = vunpack.c.l.b16 %v195
        %v265 = vunpack.c.l.b16 %v196
        %v266 = vunpack.c.l.b16 %v197
        %v267 = vunpack.c.l.b16 %v198
        %v268 = vunpack.c.l.b16 %v199
        %v269 = vunpack.c.l.b16 %v200
        %v270 = vunpack.c.l.b16 %v201
        %v271 = vunpack.c.l.b16 %v202
        %v272 = vunpack.c.l.b16 %v203
        %v273 = vpack.c.b16 %v242, %v241
        %v274 = vpack.c.b16 %v244, %v243
        %v275 = vpack.c.b16 %v246, %v245
        %v276 = vpack.c.b16 %v248, %v247
        %v277 = vpack.c.b16 %v250, %v249
        %v278 = vpack.c.b16 %v252, %v251
        %v279 = vpack.c.b16 %v254, %v253
        %v280 = vpack.c.b16 %v256, %v255
        %v281 = vpack.c.b16 %v258, %v257
        %v282 = vpack.c.b16 %v260, %v259
        %v283 = vpack.c.b16 %v262, %v261
        %v284 = vpack.c.b16 %v264, %v263
        %v285 = vpack.c.b16 %v266, %v265
        %v286 = vpack.c.b16 %v268, %v267
        %v287 = vpack.c.b16 %v270, %v269
        %v288 = vpack.c.b16 %v272, %v271
        %v294 = vunpack.c.l.b16 %v204
        %v295 = vunpack.c.l.b16 %v205
        %v296 = vunpack.c.l.b16 %v206
        %v297 = vunpack.c.l.b16 %v207
        %v298 = vunpack.c.l.b16 %v208
        %v299 = vpack.c.b16 %v295, %v294
        %v300 = vpack.c.b16 %v297, %v296
        %v301 = vpack.c.b16 %v298, %v298
        %vm304 = vcmask 293888
        %v306 = vsel %vm304, %v273, 0
        %v309 = vsel %vm304, %v274, 0
        %v312 = vsel %vm304, %v275, 0
        %v315 = vsel %vm304, %v276, 0
        %v318 = vsel %vm304, %v277, 0
        %v321 = vsel %vm304, %v278, 0
        %v324 = vsel %vm304, %v279, 0
        %v327 = vsel %vm304, %v280, 0
        %v330 = vsel %vm304, %v281, 0
        %v333 = vsel %vm304, %v282, 0
        %v336 = vsel %vm304, %v283, 0
        %v339 = vsel %vm304, %v284, 0
        %v342 = vsel %vm304, %v285, 0
        %v345 = vsel %vm304, %v286, 0
        %v348 = vsel %vm304, %v287, 0
        %v351 = vsel %vm304, %v288, 0
        %vm353 = vcmask 1041408
        %v355 = vsel %vm353, %v301, 0
        %357 = vmatprep.subr.bf16.mxu0 0
        %358 = vmatpush1.bf16.msra.mxu0 %v299
        %359 = vmatprep.subr.bf16.mxu0 0
        %360 = vmatpush1.bf16.msra.mxu0 %v300
        %361 = vmatprep.subr.bf16.mxu0 0
        %362 = vmatpush1.bf16.msra.mxu0 %v355
        %363 = vmatprep.subr.bf16.mxu0 0
        %364 = vmatpush1.bf16.msra.mxu0 0
        %365 = vmatprep.subr.bf16.mxu0 0
        %366 = vmatpush1.bf16.msra.mxu0 0
        %367 = vmatprep.subr.bf16.mxu0 0
        %368 = vmatpush1.bf16.msra.mxu0 0
        %369 = vmatprep.subr.bf16.mxu0 0
        %370 = vmatpush1.bf16.msra.mxu0 0
        %371 = vmatprep.subr.bf16.mxu0 0
        %372 = vmatpush1.bf16.msra.mxu0 0
        %373 = vmatprep.subr.bf16.mxu0 0
        %374 = vmatpush1.bf16.msra.mxu0 0
        %375 = vmatprep.subr.bf16.mxu0 0
        %376 = vmatpush1.bf16.msra.mxu0 0
        %377 = vmatprep.subr.bf16.mxu0 0
        %378 = vmatpush1.bf16.msra.mxu0 0
        %379 = vmatprep.subr.bf16.mxu0 0
        %380 = vmatpush1.bf16.msra.mxu0 0
        %381 = vmatprep.subr.bf16.mxu0 0
        %382 = vmatpush1.bf16.msra.mxu0 0
        %383 = vmatprep.subr.bf16.mxu0 0
        %384 = vmatpush1.bf16.msra.mxu0 0
        %385 = vmatprep.subr.bf16.mxu0 0
        %386 = vmatpush1.bf16.msra.mxu0 0
        %387 = vmatprep.subr.bf16.mxu0 0
        %388 = vmatpush1.bf16.msra.mxu0 0
        %389 = vmatprep.mubr.bf16.mxu0 0
        %390 = vmatmul.mubr.bf16.gmra.mrb[0].mxu0 %v306
        %v391 = vpop.f32.mrb[0].mxu0
        %v392 = vadd.f32 0.0, %v391
        %v393 = vpop.f32.mrb[0].mxu0
        %v394 = vpop.f32.mrb[0].mxu0
        %v395 = vadd.f32 0.0, %v394
        %v396 = vpop.f32.mrb[0].mxu0
        %397 = vmatprep.mubr.bf16.mxu0 0
        %398 = vmatmul.mubr.bf16.gmra.mrb[0].mxu0 %v309
        %v399 = vpop.f32.mrb[0].mxu0
        %v400 = vadd.f32 0.0, %v399
        %v401 = vpop.f32.mrb[0].mxu0
        %v402 = vpop.f32.mrb[0].mxu0
        %v403 = vadd.f32 0.0, %v402
        %v404 = vpop.f32.mrb[0].mxu0
        %405 = vmatprep.mubr.bf16.mxu0 0
        %406 = vmatmul.mubr.bf16.gmra.mrb[0].mxu0 %v312
        %v407 = vpop.f32.mrb[0].mxu0
        %v408 = vadd.f32 0.0, %v407
        %v409 = vpop.f32.mrb[0].mxu0
        %v410 = vpop.f32.mrb[0].mxu0
        %v411 = vadd.f32 0.0, %v410
        %v412 = vpop.f32.mrb[0].mxu0
        %413 = vmatprep.mubr.bf16.mxu0 0
        %414 = vmatmul.mubr.bf16.gmra.mrb[0].mxu0 %v315
        %v415 = vpop.f32.mrb[0].mxu0
        %v416 = vadd.f32 0.0, %v415
        %v417 = vpop.f32.mrb[0].mxu0
        %v418 = vpop.f32.mrb[0].mxu0
        %v419 = vadd.f32 0.0, %v418
        %v420 = vpop.f32.mrb[0].mxu0
        %421 = vmatprep.mubr.bf16.mxu0 0
        %422 = vmatmul.mubr.bf16.gmra.mrb[0].mxu0 %v318
        %v423 = vpop.f32.mrb[0].mxu0
        %v424 = vadd.f32 0.0, %v423
        %v425 = vpop.f32.mrb[0].mxu0
        %v426 = vpop.f32.mrb[0].mxu0
        %v427 = vadd.f32 0.0, %v426
        %v428 = vpop.f32.mrb[0].mxu0
        %429 = vmatprep.mubr.bf16.mxu0 0
        %430 = vmatmul.mubr.bf16.gmra.mrb[0].mxu0 %v321
        %v431 = vpop.f32.mrb[0].mxu0
        %v432 = vadd.f32 0.0, %v431
        %v433 = vpop.f32.mrb[0].mxu0
        %v434 = vpop.f32.mrb[0].mxu0
        %v435 = vadd.f32 0.0, %v434
        %v436 = vpop.f32.mrb[0].mxu0
        %437 = vmatprep.mubr.bf16.mxu0 0
        %438 = vmatmul.mubr.bf16.gmra.mrb[0].mxu0 %v324
        %v439 = vpop.f32.mrb[0].mxu0
        %v440 = vadd.f32 0.0, %v439
        %v441 = vpop.f32.mrb[0].mxu0
        %v442 = vpop.f32.mrb[0].mxu0
        %v443 = vadd.f32 0.0, %v442
        %v444 = vpop.f32.mrb[0].mxu0
        %445 = vmatprep.mubr.bf16.mxu0 0
        %446 = vmatmul.mubr.bf16.gmra.mrb[0].mxu0 %v327
        %v447 = vpop.f32.mrb[0].mxu0
        %v448 = vadd.f32 0.0, %v447
        %v449 = vpop.f32.mrb[0].mxu0
        %v450 = vpop.f32.mrb[0].mxu0
        %v451 = vadd.f32 0.0, %v450
        %v452 = vpop.f32.mrb[0].mxu0
        %453 = vmatprep.mubr.bf16.mxu0 0
        %454 = vmatmul.mubr.bf16.gmra.mrb[0].mxu0 %v330
        %v455 = vpop.f32.mrb[0].mxu0
        %v456 = vadd.f32 0.0, %v455
        %v457 = vpop.f32.mrb[0].mxu0
        %v458 = vpop.f32.mrb[0].mxu0
        %v459 = vadd.f32 0.0, %v458
        %v460 = vpop.f32.mrb[0].mxu0
        %461 = vmatprep.mubr.bf16.mxu0 0
        %462 = vmatmul.mubr.bf16.gmra.mrb[0].mxu0 %v333
        %v463 = vpop.f32.mrb[0].mxu0
        %v464 = vadd.f32 0.0, %v463
        %v465 = vpop.f32.mrb[0].mxu0
        %v466 = vpop.f32.mrb[0].mxu0
        %v467 = vadd.f32 0.0, %v466
        %v468 = vpop.f32.mrb[0].mxu0
        %469 = vmatprep.mubr.bf16.mxu0 0
        %470 = vmatmul.mubr.bf16.gmra.mrb[0].mxu0 %v336
        %v471 = vpop.f32.mrb[0].mxu0
        %v472 = vadd.f32 0.0, %v471
        %v473 = vpop.f32.mrb[0].mxu0
        %v474 = vpop.f32.mrb[0].mxu0
        %v475 = vadd.f32 0.0, %v474
        %v476 = vpop.f32.mrb[0].mxu0
        %477 = vmatprep.mubr.bf16.mxu0 0
        %478 = vmatmul.mubr.bf16.gmra.mrb[0].mxu0 %v339
        %v479 = vpop.f32.mrb[0].mxu0
        %v480 = vadd.f32 0.0, %v479
        %v481 = vpop.f32.mrb[0].mxu0
        %v482 = vpop.f32.mrb[0].mxu0
        %v483 = vadd.f32 0.0, %v482
        %v484 = vpop.f32.mrb[0].mxu0
        %485 = vmatprep.mubr.bf16.mxu0 0
        %486 = vmatmul.mubr.bf16.gmra.mrb[0].mxu0 %v342
        %v487 = vpop.f32.mrb[0].mxu0
        %v488 = vadd.f32 0.0, %v487
        %v489 = vpop.f32.mrb[0].mxu0
        %v490 = vpop.f32.mrb[0].mxu0
        %v491 = vadd.f32 0.0, %v490
        %v492 = vpop.f32.mrb[0].mxu0
        %493 = vmatprep.mubr.bf16.mxu0 0
        %494 = vmatmul.mubr.bf16.gmra.mrb[0].mxu0 %v345
        %v495 = vpop.f32.mrb[0].mxu0
        %v496 = vadd.f32 0.0, %v495
        %v497 = vpop.f32.mrb[0].mxu0
        %v498 = vpop.f32.mrb[0].mxu0
        %v499 = vadd.f32 0.0, %v498
        %v500 = vpop.f32.mrb[0].mxu0
        %501 = vmatprep.mubr.bf16.mxu0 0
        %502 = vmatmul.mubr.bf16.gmra.mrb[0].mxu0 %v348
        %v503 = vpop.f32.mrb[0].mxu0
        %v504 = vadd.f32 0.0, %v503
        %v505 = vpop.f32.mrb[0].mxu0
        %v506 = vpop.f32.mrb[0].mxu0
        %v507 = vadd.f32 0.0, %v506
        %v508 = vpop.f32.mrb[0].mxu0
        %509 = vmatprep.mubr.bf16.mxu0 0
        %510 = vmatmul.mubr.bf16.gmra.mrb[0].mxu0 %v351
        %v511 = vpop.f32.mrb[0].mxu0
        %v512 = vadd.f32 0.0, %v511
        %v513 = vpop.f32.mrb[0].mxu0
        %v514 = vpop.f32.mrb[0].mxu0
        %v515 = vadd.f32 0.0, %v514
        %v516 = vpop.f32.mrb[0].mxu0
        %517 = vdwg.mxu0
        %518 = vst [vmem:[%s161] sm:$0xff] %v392
        %519 = vst [vmem:[%s161 + $0x8] sm:$0xff] %v395
        %520 = vst [vmem:[%s161 + $0x10] sm:$0xff] %v400
        %521 = vst [vmem:[%s161 + $0x18] sm:$0xff] %v403
        %522 = vst [vmem:[%s161 + $0x20] sm:$0xff] %v408
        %523 = vst [vmem:[%s161 + $0x28] sm:$0xff] %v411
        %524 = vst [vmem:[%s161 + $0x30] sm:$0xff] %v416
        %525 = vst [vmem:[%s161 + $0x38] sm:$0xff] %v419
        %526 = vst [vmem:[%s161 + $0x40] sm:$0xff] %v424
        %527 = vst [vmem:[%s161 + $0x48] sm:$0xff] %v427
        %528 = vst [vmem:[%s161 + $0x50] sm:$0xff] %v432
        %529 = vst [vmem:[%s161 + $0x58] sm:$0xff] %v435
        %530 = vst [vmem:[%s161 + $0x60] sm:$0xff] %v440
        %531 = vst [vmem:[%s161 + $0x68] sm:$0xff] %v443
        %532 = vst [vmem:[%s161 + $0x70] sm:$0xff] %v448
        %533 = vst [vmem:[%s161 + $0x78] sm:$0xff] %v451
        %534 = vst [vmem:[%s161 + $0x80] sm:$0xff] %v456
        %535 = vst [vmem:[%s161 + $0x88] sm:$0xff] %v459
        %536 = vst [vmem:[%s161 + $0x90] sm:$0xff] %v464
        %537 = vst [vmem:[%s161 + $0x98] sm:$0xff] %v467
        %538 = vst [vmem:[%s161 + $0xa0] sm:$0xff] %v472
        %539 = vst [vmem:[%s161 + $0xa8] sm:$0xff] %v475
        %540 = vst [vmem:[%s161 + $0xb0] sm:$0xff] %v480
        %541 = vst [vmem:[%s161 + $0xb8] sm:$0xff] %v483
        %542 = vst [vmem:[%s161 + $0xc0] sm:$0xff] %v488
        %543 = vst [vmem:[%s161 + $0xc8] sm:$0xff] %v491
        %544 = vst [vmem:[%s161 + $0xd0] sm:$0xff] %v496
        %545 = vst [vmem:[%s161 + $0xd8] sm:$0xff] %v499
        %546 = vst [vmem:[%s161 + $0xe0] sm:$0xff] %v504
        %547 = vst [vmem:[%s161 + $0xe8] sm:$0xff] %v507
        %548 = vst [vmem:[%s161 + $0xf0] sm:$0xff] %v512
        %549 = vst [vmem:[%s161 + $0xf8] sm:$0xff] %v515
        %p550 = scmp.eq.s32.totalorder %s19, 0
        // Predicated region
        $region29: #{tpu_custom_call.1} parent=27 // pred_check
          %p551 = pneg %p550
        $region30: #{tpu_custom_call.1} parent=27 // pred_check_branch
          %553 = sbr.rel (%p551) target = $region32
        $region31: #{tpu_custom_call.1} parent=27 // pred_region
          %554 = vst [vmem:[#allocation4] sm:$0x3] 0.0
        $region32: #{tpu_custom_call.1} parent=27 // pred_fallthru
          _
        %v555 = vadd.f32 %v392, %v395
        %v556 = vadd.f32 %v555, %v400
        %v557 = vadd.f32 %v556, %v403
        %v558 = vadd.f32 %v557, %v408
        %v559 = vadd.f32 %v558, %v411
        %v560 = vadd.f32 %v559, %v416
        %v561 = vadd.f32 %v560, %v419
        %v562 = vadd.f32 %v561, %v424
        %v563 = vadd.f32 %v562, %v427
        %v564 = vadd.f32 %v563, %v432
        %v565 = vadd.f32 %v564, %v435
        %v566 = vadd.f32 %v565, %v440
        %v567 = vadd.f32 %v566, %v443
        %v568 = vadd.f32 %v567, %v448
        %v569 = vadd.f32 %v568, %v451
        %v570 = vadd.f32 %v569, %v456
        %v571 = vadd.f32 %v570, %v459
        %v572 = vadd.f32 %v571, %v464
        %v573 = vadd.f32 %v572, %v467
        %v574 = vadd.f32 %v573, %v472
        %v575 = vadd.f32 %v574, %v475
        %v576 = vadd.f32 %v575, %v480
        %v577 = vadd.f32 %v576, %v483
        %v578 = vadd.f32 %v577, %v488
        %v579 = vadd.f32 %v578, %v491
        %v580 = vadd.f32 %v579, %v496
        %v581 = vadd.f32 %v580, %v499
        %v582 = vadd.f32 %v581, %v504
        %v583 = vadd.f32 %v582, %v507
        %v584 = vadd.f32 %v583, %v512
        %v585 = vadd.f32 %v584, %v515
        %v586 = vrot.slane %v585, 4
        %v587 = vadd.f32 %v585, %v586
        %v588 = vrot.slane %v587, 2
        %v589 = vadd.f32 %v587, %v588
        %v590 = vrot.slane %v589, 1
        %v591 = vadd.f32 %v589, %v590
        %v592 = vmul.f32 %v392, %v392
        %v593 = vmul.f32 %v395, %v395
        %v594 = vmul.f32 %v400, %v400
        %v595 = vmul.f32 %v403, %v403
        %v596 = vmul.f32 %v408, %v408
        %v597 = vmul.f32 %v411, %v411
        %v598 = vmul.f32 %v416, %v416
        %v599 = vmul.f32 %v419, %v419
        %v600 = vmul.f32 %v424, %v424
        %v601 = vmul.f32 %v427, %v427
        %v602 = vmul.f32 %v432, %v432
        %v603 = vmul.f32 %v435, %v435
        %v604 = vmul.f32 %v440, %v440
        %v605 = vmul.f32 %v443, %v443
        %v606 = vmul.f32 %v448, %v448
        %v607 = vmul.f32 %v451, %v451
        %v608 = vmul.f32 %v456, %v456
        %v609 = vmul.f32 %v459, %v459
        %v610 = vmul.f32 %v464, %v464
        %v611 = vmul.f32 %v467, %v467
        %v612 = vmul.f32 %v472, %v472
        %v613 = vmul.f32 %v475, %v475
        %v614 = vmul.f32 %v480, %v480
        %v615 = vmul.f32 %v483, %v483
        %v616 = vmul.f32 %v488, %v488
        %v617 = vmul.f32 %v491, %v491
        %v618 = vmul.f32 %v496, %v496
        %v619 = vmul.f32 %v499, %v499
        %v620 = vmul.f32 %v504, %v504
        %v621 = vmul.f32 %v507, %v507
        %v622 = vmul.f32 %v512, %v512
        %v623 = vmul.f32 %v515, %v515
        %v624 = vadd.f32 %v592, %v593
        %v625 = vadd.f32 %v624, %v594
        %v626 = vadd.f32 %v625, %v595
        %v627 = vadd.f32 %v626, %v596
        %v628 = vadd.f32 %v627, %v597
        %v629 = vadd.f32 %v628, %v598
        %v630 = vadd.f32 %v629, %v599
        %v631 = vadd.f32 %v630, %v600
        %v632 = vadd.f32 %v631, %v601
        %v633 = vadd.f32 %v632, %v602
        %v634 = vadd.f32 %v633, %v603
        %v635 = vadd.f32 %v634, %v604
        %v636 = vadd.f32 %v635, %v605
        %v637 = vadd.f32 %v636, %v606
        %v638 = vadd.f32 %v637, %v607
        %v639 = vadd.f32 %v638, %v608
        %v640 = vadd.f32 %v639, %v609
        %v641 = vadd.f32 %v640, %v610
        %v642 = vadd.f32 %v641, %v611
        %v643 = vadd.f32 %v642, %v612
        %v644 = vadd.f32 %v643, %v613
        %v645 = vadd.f32 %v644, %v614
        %v646 = vadd.f32 %v645, %v615
        %v647 = vadd.f32 %v646, %v616
        %v648 = vadd.f32 %v647, %v617
        %v649 = vadd.f32 %v648, %v618
        %v650 = vadd.f32 %v649, %v619
        %v651 = vadd.f32 %v650, %v620
        %v652 = vadd.f32 %v651, %v621
        %v653 = vadd.f32 %v652, %v622
        %v654 = vadd.f32 %v653, %v623
        %v655 = vrot.slane %v654, 4
        %v656 = vadd.f32 %v654, %v655
        %v657 = vrot.slane %v656, 2
        %v658 = vadd.f32 %v656, %v657
        %v659 = vrot.slane %v658, 1
        %v660 = vadd.f32 %v658, %v659
        %v661 = vld [vmem:[#allocation4] sm:$0x1]
        %v662 = vadd.f32 %v661, %v591
        %663 = vst [vmem:[#allocation4] sm:$0x1] %v662
        %v664 = vld [vmem:[#allocation4 + $0x1] sm:$0x1]
        %v665 = vadd.f32 %v664, %v660
        %666 = vst [vmem:[#allocation4 + $0x1] sm:$0x1] %v665
        %s667 = sand.u32 %s74, 1
        %s668 = scalar_lea.sflag [#allocation3], %s667
        %s669 = sand.u32 %s74, 1
        %s670 = smul.addr %s669, 256
        %s671 = scalar_lea.vmem [#allocation2], %s670
        // Predicated region
        $region33: #{tpu_custom_call.1} parent=27 // pred_check
          %p672 = pneg %p84
        $region34: #{tpu_custom_call.1} parent=27 // pred_check_branch
          %674 = sbr.rel (%p672) target = $region36
        $region35: #{tpu_custom_call.1} parent=27 // pred_region
          %s675 = smul.u32 32, %s19
          %s677 = ssub.s32 4096, 4096
          %678 = vsyncadd %s668, %s677
          %s679 = smul.addr %s675, 128
          %s680 = scalar_lea.hbm %s2, %s679
          %s681 = sshll.u32 %s671, 4
          %s682 = int_to_ptr.vmem [resolvable:$true] %s681
          %687 = dma.vmem_to_hbm [thread:$0]  %s682, 4096, %s680, %s668, 128, 128, 8
        $region36: #{tpu_custom_call.1} parent=27 // pred_fallthru
          _
        // Predicated region
        $region37: #{tpu_custom_call.1} parent=27 // pred_check
          %p688 = pneg %p105
        $region38: #{tpu_custom_call.1} parent=27 // pred_check_branch
          %690 = sbr.rel (%p688) target = $region40
        $region39: #{tpu_custom_call.1} parent=27 // pred_region
          %s692 = ssub.s32 32, 32
          %693 = vsyncadd [#allocation5], %s692
          %s695 = sshll.u32 [#allocation4], 4
          %s696 = int_to_ptr.vmem [resolvable:$true] %s695
          %698 = dma.vmem_to_hbm [thread:$0]  %s696, 32, %s3, [#allocation5]
        $region40: #{tpu_custom_call.1} parent=27 // pred_fallthru
          _
        // Predicated region
        $region41: #{tpu_custom_call.1} parent=27 // pred_check
          %p699 = pneg %p105
        $region42: #{tpu_custom_call.1} parent=27 // pred_check_branch
          %701 = sbr.rel (%p699) target = $region44
        $region43: #{tpu_custom_call.1} parent=27 // pred_region
          %702 = dma.done [#allocation5], 32
        $region44: #{tpu_custom_call.1} parent=27 // pred_fallthru
          _
      $region28: #{tpu_custom_call.1} parent=5 // pred_fallthru
        _
      %p703 = scmp.le.s32.totalorder 2, %s14
      // Predicated region
      $region45: #{tpu_custom_call.1} parent=5 // pred_check
        %p704 = pneg %p703
      $region46: #{tpu_custom_call.1} parent=5 // pred_check_branch
        %706 = sbr.rel (%p704) target = $region48
      $region47: #{tpu_custom_call.1} parent=5 // pred_region
        %s707 = ssub.s32 %s14, 2
        // Predicated region
        $region49: #{tpu_custom_call.1} parent=47 // pred_check
          %p708 = pneg %p90
        $region50: #{tpu_custom_call.1} parent=47 // pred_check_branch
          %710 = sbr.rel (%p708) target = $region52
        $region51: #{tpu_custom_call.1} parent=47 // pred_region
          %s711 = sand.u32 %s75, 1
          %s712 = scalar_lea.sflag [#allocation3], %s711
          %s713 = sand.u32 %s75, 1
          %s714 = smul.addr %s713, 256
          %s715 = scalar_lea.vmem [#allocation2], %s714
          %716 = dma.done %s712, 4096
        $region52: #{tpu_custom_call.1} parent=47 // pred_fallthru
          _
      $region48: #{tpu_custom_call.1} parent=5 // pred_fallthru
        _
    $region6: #{tpu_custom_call.1} parent=1 // loop_footer
      %s18 = sadd.s32 1, %s14
    $region7: #{tpu_custom_call.1} parent=1 // loop_footer_branch
      %13 = sbr.rel target = $region3
    $region8: #{tpu_custom_call.1} parent=1 // loop_exit
      _
    %717 = vsyncpa [#allocation3], 1
    %s718 = scalar_lea.sflag [#allocation3], 1
    %719 = vsyncpa %s718, 1
    %720 = vsyncpa [#allocation5], 1

</llo_original>
